<compile_context>
chip_gen: v6e
topology: v6e:2x2x1
jax: 0.10.0
libtpu: 0.0.40
codegen_flags: <defaults>
</compile_context>

<pallas_src>
import jax
import jax.numpy as jnp
from jax.experimental import pallas as pl
from jax.experimental.pallas import tpu as pltpu

LANE = 128          # lane width of a vreg
_BATCH_TILE = 512   # rows per grid step when the batch is large


def _round_up(n, m):
    return ((n + m - 1) // m) * m


def simplefc_kernel(x_ref, w1_ref, w23_ref, o_ref):
    # Layer 1: (tm, in) @ (in, h1_pad) on the MXU, bf16 operands, f32 accumulate.
    x = x_ref[...].astype(jnp.bfloat16)
    h = jnp.dot(x, w1_ref[...], preferred_element_type=jnp.float32)
    h = jnp.maximum(h, 0.0)                                   # ReLU (VPU, f32)
    # Layers 2+3 folded: (tm, h1_pad) @ (h1_pad, 10), f32 accumulate.
    out = jnp.dot(h.astype(jnp.bfloat16), w23_ref[...],
                  preferred_element_type=jnp.float32)
    o_ref[...] = out.astype(o_ref.dtype)


def prepare_weights(w1, w2, w3):
    """Fold + pad + cast the PyTorch-layout weights once, outside the hot path.

    w1: (hidden1, in), w2: (hidden2, hidden1), w3: (10, hidden2)  (out, in) layout.
    Returns bf16 slabs:
      w1p : (in, hidden1_pad)      -- W1^T, columns zero-padded to a 128-multiple
      w23p: (hidden1_pad, 10)      -- (W2^T @ W3^T), rows zero-padded to match
    """
    hidden1 = w1.shape[0]
    out_dim = w3.shape[0]

    w1_t = jnp.asarray(w1, jnp.float32).T                                   # (in, hidden1)
    w23 = jnp.asarray(w2, jnp.float32).T @ jnp.asarray(w3, jnp.float32).T   # (hidden1, 10)

    h1_pad = _round_up(hidden1, LANE)
    w1p = jnp.pad(w1_t, ((0, 0), (0, h1_pad - hidden1))).astype(jnp.bfloat16)
    w23p = jnp.pad(w23, ((0, h1_pad - hidden1), (0, 0))).astype(jnp.bfloat16)
    del out_dim
    return w1p, w23p


@jax.jit
def simplefc_forward(x, w1p, w23p):
    """x: (B, input_size) f32. w1p/w23p: outputs of prepare_weights (bf16)."""
    B, in_dim = x.shape
    h1_pad = w1p.shape[1]
    out_dim = w23p.shape[1]

    flops = 2 * B * (in_dim * h1_pad + h1_pad * out_dim)
    bytes_accessed = (x.size * x.dtype.itemsize
                      + w1p.size * w1p.dtype.itemsize
                      + w23p.size * w23p.dtype.itemsize
                      + B * out_dim * x.dtype.itemsize)
    cost = pl.CostEstimate(flops=flops, transcendentals=0,
                           bytes_accessed=bytes_accessed)
    out_shape = jax.ShapeDtypeStruct((B, out_dim), x.dtype)

    if B <= _BATCH_TILE:
        # Small batch: single step, all operands whole-array VMEM resident.
        return pl.pallas_call(
            simplefc_kernel,
            out_shape=out_shape,
            in_specs=[pl.BlockSpec(memory_space=pltpu.MemorySpace.VMEM)] * 3,
            out_specs=pl.BlockSpec(memory_space=pltpu.MemorySpace.VMEM),
            cost_estimate=cost,
        )(x, w1p, w23p)

    # Large batch: pipeline over row tiles.  Weights use a constant index_map
    # (fetched once, VMEM resident); batch axis is "parallel" so v7x shards it
    # across both TensorCores (no-op on v5e/v6e).
    tm = _BATCH_TILE
    return pl.pallas_call(
        simplefc_kernel,
        out_shape=out_shape,
        grid=(pl.cdiv(B, tm),),
        in_specs=[
            pl.BlockSpec((tm, in_dim), lambda i: (i, 0)),
            pl.BlockSpec((in_dim, h1_pad), lambda i: (0, 0)),
            pl.BlockSpec((h1_pad, out_dim), lambda i: (0, 0)),
        ],
        out_specs=pl.BlockSpec((tm, out_dim), lambda i: (i, 0)),
        compiler_params=pltpu.CompilerParams(
            dimension_semantics=("parallel",)),
        cost_estimate=cost,
    )(x, w1p, w23p)


def init_params(key, input_size, channels):
    """Deterministic init matching PyTorch Linear weight shapes (out, in)."""
    hidden1 = input_size * channels
    hidden2 = input_size * 10
    k1, k2, k3 = jax.random.split(key, 3)

    def uniform_like_torch(k, out_f, in_f):
        bound = 1.0 / jnp.sqrt(in_f)
        return jax.random.uniform(k, (out_f, in_f), jnp.float32, -bound, bound)

    w1 = uniform_like_torch(k1, hidden1, input_size)   # (in*ch, in)
    w2 = uniform_like_torch(k2, hidden2, hidden1)      # (in*10, in*ch)
    w3 = uniform_like_torch(k3, 10, hidden2)           # (10, in*10)
    return w1, w2, w3


def reference_forward(x, w1, w2, w3):
    h = jnp.maximum(x @ w1.T, 0.0)
    h = h @ w2.T
    return h @ w3.T


if __name__ == "__main__":
    key = jax.random.PRNGKey(0)
    kx, kp = jax.random.split(key)

    batch = 8
    input_size = 16
    channels = 4

    x = jax.random.normal(kx, (batch, input_size), jnp.float32)
    w1, w2, w3 = init_params(kp, input_size, channels)

    # One-time weight preparation: fold W2@W3, pad hidden to 128, cast to bf16.
    w1p, w23p = prepare_weights(w1, w2, w3)

    out = jax.block_until_ready(simplefc_forward(x, w1p, w23p))
    ref = reference_forward(x, w1, w2, w3)
    assert out.shape == (batch, 10), out.shape
    # bf16 weights/activations -> loosened tolerance vs the exact f32 reference.
    assert jnp.allclose(out, ref, atol=3e-2, rtol=3e-2), "mismatch (small batch)"

    # Also exercise the pipelined large-batch path (512-row tiles, VMEM-resident
    # weights, parallel batch axis).
    big_batch = 1024
    xb = jax.random.normal(jax.random.PRNGKey(1), (big_batch, input_size), jnp.float32)
    out_b = jax.block_until_ready(simplefc_forward(xb, w1p, w23p))
    ref_b = reference_forward(xb, w1, w2, w3)
    assert out_b.shape == (big_batch, 10), out_b.shape
    assert jnp.allclose(out_b, ref_b, atol=3e-2, rtol=3e-2), "mismatch (large batch)"

    print("KERNEL_OK")
</pallas_src>

<mosaic_0001>
module attributes {stable_mosaic.version = 11 : i64} {
  func.func @simplefc_kernel(%arg0: memref<8x16xf32, #tpu.memory_space<vmem>>, %arg1: memref<16x128xbf16, #tpu.memory_space<vmem>>, %arg2: memref<128x10xbf16, #tpu.memory_space<vmem>>, %arg3: memref<8x10xf32, #tpu.memory_space<vmem>>) attributes {dimension_semantics = [], scalar_prefetch = 0 : i64, scratch_operands = 0 : i64, tpu.core_type = #tpu.core_type<tc>} {
    %c0 = arith.constant 0 : index
    %c0_0 = arith.constant 0 : index
    %0 = vector.load %arg0[%c0, %c0_0] : memref<8x16xf32, #tpu.memory_space<vmem>>, vector<8x16xf32>
    %1 = arith.truncf %0 : vector<8x16xf32> to vector<8x16xbf16>
    %c0_1 = arith.constant 0 : index
    %c0_2 = arith.constant 0 : index
    %2 = vector.load %arg1[%c0_1, %c0_2] : memref<16x128xbf16, #tpu.memory_space<vmem>>, vector<16x128xbf16>
    %cst = arith.constant dense<0.000000e+00> : vector<8x128xf32>
    %3 = tpu.matmul %1, %2, %cst {dimension_numbers = #tpu.dot_dimension_numbers<[1], [0], [0], [1], [0, 0, 1, 1], [], []>} : vector<8x16xbf16>, vector<16x128xbf16>, vector<8x128xf32> -> vector<8x128xf32>
    %cst_3 = arith.constant 0.000000e+00 : f32
    %4 = vector.broadcast %cst_3 : f32 to vector<8x128xf32>
    %5 = arith.maximumf %3, %4 : vector<8x128xf32>
    %6 = arith.truncf %5 : vector<8x128xf32> to vector<8x128xbf16>
    %c0_4 = arith.constant 0 : index
    %c0_5 = arith.constant 0 : index
    %7 = vector.load %arg2[%c0_4, %c0_5] : memref<128x10xbf16, #tpu.memory_space<vmem>>, vector<128x10xbf16>
    %cst_6 = arith.constant dense<0.000000e+00> : vector<8x10xf32>
    %8 = tpu.matmul %6, %7, %cst_6 {dimension_numbers = #tpu.dot_dimension_numbers<[1], [0], [0], [1], [0, 0, 1, 1], [], []>} : vector<8x128xbf16>, vector<128x10xbf16>, vector<8x10xf32> -> vector<8x10xf32>
    %c0_7 = arith.constant 0 : index
    %c0_8 = arith.constant 0 : index
    %9 = vector.load %arg3[%c0_7, %c0_8] : memref<8x10xf32, #tpu.memory_space<vmem>>, vector<8x10xf32>
    tpu.vector_store %arg3[%c0_7, %c0_8], %8 {strides = array<i32>} : memref<8x10xf32, #tpu.memory_space<vmem>>, vector<8x10xf32>,
    return
  }
}

</mosaic_0001>

<llo_original>
// kernel: simplefc_forward.1
$region0: #{simplefc_forward.1}
  #allocation0 [shape = 'u32[]', space=smem, size = 0x4, offset = 0x4, fixed_abs, tag = 'smem constant byte address 0x4 - core index']
  #allocation1 [shape = 'u32[144,128]{1,0:T(1,128)}', space=vmem, size = 0x12000, scoped, tag = 'internal scratch']
  %s0 = inlined_call_operand.vmem [shape: f32[8,16], index: 0, kind: input, shape index: {}]
  %s1 = inlined_call_operand.vmem [shape: bf16[16,128], index: 1, kind: input, shape index: {}]
  %s2 = inlined_call_operand.vmem [shape: bf16[128,10], index: 2, kind: input, shape index: {}]
  %s3 = inlined_call_operand.hbm [shape: f32[8,10], index: 3, kind: output, shape index: {}]
  %s4 = sld [smem:[#allocation0]]
  $region22: #{simplefc_forward.1} parent=0
    _
  %s6 = ssub.s32 1, %s4
  %s7 = scalar_select 0, %s6, %s4
  $region1: #{simplefc_forward.1} parent=0
    #allocation2 [shape = 'u8[4096]{0}', space=vmem, size = 0x1000, scoped, tag = 'output window, operand 0, single buffered']
    #allocation3 [shape = 's32[1]{0}', space=sflag, size = 0x4, scoped, tag = 'scoped memory for simplefc_forward.1']
    %8 = vsyncpa [#allocation3], 0
    // Predicated region
    $region2: #{simplefc_forward.1} parent=1 // pred_check
      _
    $region3: #{simplefc_forward.1} parent=1 // pred_check_branch
      %10 = sbr.rel (0) target = $region5
    $region4: #{simplefc_forward.1} parent=1 // pred_region
      _
    $region5: #{simplefc_forward.1} parent=1 // pred_fallthru
      _
    // Predicated region
    $region6: #{simplefc_forward.1} parent=1 // pred_check
      _
    $region7: #{simplefc_forward.1} parent=1 // pred_check_branch
      %12 = sbr.rel (0) target = $region9
    $region8: #{simplefc_forward.1} parent=1 // pred_region
      _
    $region9: #{simplefc_forward.1} parent=1 // pred_fallthru
      _
    // Predicated region
    $region10: #{simplefc_forward.1} parent=1 // pred_check
      _
    $region11: #{simplefc_forward.1} parent=1 // pred_check_branch
      %14 = sbr.rel (0) target = $region13
    $region12: #{simplefc_forward.1} parent=1 // pred_region
      _
    $region13: #{simplefc_forward.1} parent=1 // pred_fallthru
      _
    %v16 = vld [vmem:[%s0] sm:$0xff]
    %v17 = vpack.c.bf16 %v16, %v16
    %v18 = vld [vmem:[%s1] sm:$0xf]
    %v19 = vld [vmem:[%s1 + $0x4] sm:$0xf]
    %v22 = vunpack.c.l.b16 %v18
    %v23 = vunpack.c.l.b16 %v19
    %v24 = vpack.c.b16 %v23, %v22
    %vm26 = vcmask 130048
    %v28 = vsel %vm26, %v17, 0
    %30 = vmatprep.subr.bf16.mxu0 0
    %31 = vmatpush1.bf16.msra.mxu0 0
    %32 = vmatprep.subr.bf16.mxu0 0
    %33 = vmatpush1.bf16.msra.mxu0 0
    %34 = vmatprep.subr.bf16.mxu0 0
    %35 = vmatpush1.bf16.msra.mxu0 0
    %36 = vmatprep.subr.bf16.mxu0 0
    %37 = vmatpush1.bf16.msra.mxu0 0
    %38 = vmatprep.subr.bf16.mxu0 0
    %39 = vmatpush1.bf16.msra.mxu0 0
    %40 = vmatprep.subr.bf16.mxu0 0
    %41 = vmatpush1.bf16.msra.mxu0 0
    %42 = vmatprep.subr.bf16.mxu0 0
    %43 = vmatpush1.bf16.msra.mxu0 0
    %44 = vmatprep.subr.bf16.mxu0 0
    %45 = vmatpush1.bf16.msra.mxu0 %v24
    %46 = vmatprep.subr.bf16.mxu0 0
    %47 = vmatpush2.bf16.msra.mxu0 0
    %48 = vmatprep.subr.bf16.mxu0 0
    %49 = vmatpush2.bf16.msra.mxu0 0
    %50 = vmatprep.subr.bf16.mxu0 0
    %51 = vmatpush2.bf16.msra.mxu0 0
    %52 = vmatprep.subr.bf16.mxu0 0
    %53 = vmatpush2.bf16.msra.mxu0 0
    %54 = vmatprep.subr.bf16.mxu0 0
    %55 = vmatpush2.bf16.msra.mxu0 0
    %56 = vmatprep.subr.bf16.mxu0 0
    %57 = vmatpush2.bf16.msra.mxu0 0
    %58 = vmatprep.subr.bf16.mxu0 0
    %59 = vmatpush2.bf16.msra.mxu0 0
    %60 = vmatprep.subr.bf16.mxu0 0
    %61 = vmatpush2.bf16.msra.mxu0 0
    %62 = vmatprep.mubr.bf16.mxu0 0
    %63 = vmatmul.mubr.bf16.gmra.mxu0 %v28
    %v64 = vpop.f32.mrf.mxu0
    %v65 = vadd.f32 0.0, %v64
    %v66 = vpop.f32.mrf.mxu0
    %v67 = vpop.f32.mrf.mxu0
    %v68 = vpop.f32.mrf.mxu0
    %69 = vdwg.mxu0
    %v70 = vmax.f32 %v65, 0.0
    %v71 = vpack.c.bf16 %v70, %v70
    %v72 = vld [vmem:[%s2] sm:$0xf]
    %v73 = vld [vmem:[%s2 + $0x4] sm:$0xf]
    %v74 = vld [vmem:[%s2 + $0x8] sm:$0xf]
    %v75 = vld [vmem:[%s2 + $0xc] sm:$0xf]
    %v76 = vld [vmem:[%s2 + $0x10] sm:$0xf]
    %v77 = vld [vmem:[%s2 + $0x14] sm:$0xf]
    %v78 = vld [vmem:[%s2 + $0x18] sm:$0xf]
    %v79 = vld [vmem:[%s2 + $0x1c] sm:$0xf]
    %v80 = vld [vmem:[%s2 + $0x20] sm:$0xf]
    %v81 = vld [vmem:[%s2 + $0x24] sm:$0xf]
    %v82 = vld [vmem:[%s2 + $0x28] sm:$0xf]
    %v83 = vld [vmem:[%s2 + $0x2c] sm:$0xf]
    %v84 = vld [vmem:[%s2 + $0x30] sm:$0xf]
    %v85 = vld [vmem:[%s2 + $0x34] sm:$0xf]
    %v86 = vld [vmem:[%s2 + $0x38] sm:$0xf]
    %v87 = vld [vmem:[%s2 + $0x3c] sm:$0xf]
    %v104 = vunpack.c.l.b16 %v72
    %v105 = vunpack.c.l.b16 %v73
    %v106 = vunpack.c.l.b16 %v74
    %v107 = vunpack.c.l.b16 %v75
    %v108 = vunpack.c.l.b16 %v76
    %v109 = vunpack.c.l.b16 %v77
    %v110 = vunpack.c.l.b16 %v78
    %v111 = vunpack.c.l.b16 %v79
    %v112 = vunpack.c.l.b16 %v80
    %v113 = vunpack.c.l.b16 %v81
    %v114 = vunpack.c.l.b16 %v82
    %v115 = vunpack.c.l.b16 %v83
    %v116 = vunpack.c.l.b16 %v84
    %v117 = vunpack.c.l.b16 %v85
    %v118 = vunpack.c.l.b16 %v86
    %v119 = vunpack.c.l.b16 %v87
    %v120 = vpack.c.b16 %v105, %v104
    %v121 = vpack.c.b16 %v107, %v106
    %v122 = vpack.c.b16 %v109, %v108
    %v123 = vpack.c.b16 %v111, %v110
    %v124 = vpack.c.b16 %v113, %v112
    %v125 = vpack.c.b16 %v115, %v114
    %v126 = vpack.c.b16 %v117, %v116
    %v127 = vpack.c.b16 %v119, %v118
    %136 = vmatprep.subr.bf16.mxu0 0
    %137 = vmatpush1.bf16.msra.mxu0 %v127
    %138 = vmatprep.subr.bf16.mxu0 0
    %139 = vmatpush1.bf16.msra.mxu0 %v126
    %140 = vmatprep.subr.bf16.mxu0 0
    %141 = vmatpush1.bf16.msra.mxu0 %v125
    %142 = vmatprep.subr.bf16.mxu0 0
    %143 = vmatpush1.bf16.msra.mxu0 %v124
    %144 = vmatprep.subr.bf16.mxu0 0
    %145 = vmatpush1.bf16.msra.mxu0 %v123
    %146 = vmatprep.subr.bf16.mxu0 0
    %147 = vmatpush1.bf16.msra.mxu0 %v122
    %148 = vmatprep.subr.bf16.mxu0 0
    %149 = vmatpush1.bf16.msra.mxu0 %v121
    %150 = vmatprep.subr.bf16.mxu0 0
    %151 = vmatpush1.bf16.msra.mxu0 %v120
    %152 = vmatprep.subr.bf16.mxu0 0
    %153 = vmatpush2.bf16.msra.mxu0 0
    %154 = vmatprep.subr.bf16.mxu0 0
    %155 = vmatpush2.bf16.msra.mxu0 0
    %156 = vmatprep.subr.bf16.mxu0 0
    %157 = vmatpush2.bf16.msra.mxu0 0
    %158 = vmatprep.subr.bf16.mxu0 0
    %159 = vmatpush2.bf16.msra.mxu0 0
    %160 = vmatprep.subr.bf16.mxu0 0
    %161 = vmatpush2.bf16.msra.mxu0 0
    %162 = vmatprep.subr.bf16.mxu0 0
    %163 = vmatpush2.bf16.msra.mxu0 0
    %164 = vmatprep.subr.bf16.mxu0 0
    %165 = vmatpush2.bf16.msra.mxu0 0
    %166 = vmatprep.subr.bf16.mxu0 0
    %167 = vmatpush2.bf16.msra.mxu0 0
    %168 = vmatprep.mubr.bf16.mxu0 0
    %169 = vmatmul.mubr.bf16.gmra.mxu0 %v71
    %v170 = vpop.f32.mrf.mxu0
    %v171 = vadd.f32 0.0, %v170
    %v172 = vpop.f32.mrf.mxu0
    %v173 = vpop.f32.mrf.mxu0
    %v174 = vpop.f32.mrf.mxu0
    %175 = vdwg.mxu0
    %vm176 = vcmask 80896
    %177 = vst.msk [vmem:[#allocation2] sm:$0xff] %vm176, %v171
    // Predicated region
    $region14: #{simplefc_forward.1} parent=1 // pred_check
      _
    $region15: #{simplefc_forward.1} parent=1 // pred_check_branch
      %179 = sbr.rel (0) target = $region17
    $region16: #{simplefc_forward.1} parent=1 // pred_region
      %s181 = ssub.s32 128, 128
      %182 = vsyncadd [#allocation3], %s181
      %s184 = sshll.u32 [#allocation2], 4
      %s185 = int_to_ptr.vmem [resolvable:$true] %s184
      %187 = dma.vmem_to_hbm [thread:$0]  %s185, 128, %s3, [#allocation3]
    $region17: #{simplefc_forward.1} parent=1 // pred_fallthru
      _
    // Predicated region
    $region18: #{simplefc_forward.1} parent=1 // pred_check
      _
    $region19: #{simplefc_forward.1} parent=1 // pred_check_branch
      %189 = sbr.rel (0) target = $region21
    $region20: #{simplefc_forward.1} parent=1 // pred_region
      %190 = dma.done [#allocation3], 128
    $region21: #{simplefc_forward.1} parent=1 // pred_fallthru
      _
    %191 = vsyncpa [#allocation3], 1

</llo_original>
